<compile_context>
chip_gen: v5e
topology: v5e:2x2
jax: 0.10.0
libtpu: 0.0.40
codegen_flags: <defaults>
</compile_context>

<pallas_src>
import math

import jax
import jax.numpy as jnp
from jax import lax
from jax.experimental import pallas as pl
from jax.experimental.pallas import tpu as pltpu

_LANES = 128
_TRANS_B = (((1,), (1,)), ((), ()))   # contract last dims of both operands (q @ k.T style)


def _electra_disc_kernel(x_ref, w1_ref, b1_ref, w2_ref, b2_ref, y_ref,
                         probs_ref, preds_ref, bce_ref):
    # dense: [tm, H] @ [H, H] on the MXU, bf16 operands, f32 accumulation.
    x_bf = x_ref[...].astype(jnp.bfloat16)
    h = jnp.dot(x_bf, w1_ref[...], preferred_element_type=jnp.float32)
    h = h + b1_ref[...]

    # GELU activation (tanh approximation), kept in f32 on the VPU/EUP.
    # TODO(synk): HF "gelu" default is erf-based; tanh approximation used to stay
    # within guaranteed Mosaic transcendental lowerings (exp/tanh on the EUP).
    c = 0.7978845608028654  # sqrt(2/pi)
    h = 0.5 * h * (1.0 + jnp.tanh(c * (h + 0.044715 * h * h * h)))

    # dense_prediction: contract H against the single output column with a
    # rhs-transposed matmul -> lane-dense (1, tm) logits row (no N=1 MXU column).
    z = lax.dot_general(w2_ref[...], h, _TRANS_B,
                        preferred_element_type=jnp.float32)       # (1, tm)
    z = z + b2_ref[...]

    n_sub = probs_ref.shape[0]            # tm // 128
    for r in range(n_sub):                # static unroll, 128 rows per chunk
        zr = z[:, r * _LANES:(r + 1) * _LANES]                    # (1, 128)
        yr = y_ref[pl.ds(r, 1), :]                                # (1, 128)
        # sigmoid via EUP exp + approx reciprocal (EUP slot, keeps VALU free)
        probs_ref[pl.ds(r, 1), :] = pl.reciprocal(1.0 + jnp.exp(-zr), approx=True)
        # preds = round((sign(z)+1)/2)  ==  1.0 where z > 0 else 0.0
        preds_ref[pl.ds(r, 1), :] = jnp.where(zr > 0.0, 1.0, 0.0)
        # numerically stable BCE-with-logits, per element (mean taken in wrapper)
        bce_ref[pl.ds(r, 1), :] = (jnp.maximum(zr, 0.0) - zr * yr
                                   + jnp.log(1.0 + jnp.exp(-jnp.abs(zr))))


def electra_discriminator_predictions(x, labels, w1, b1, w2, b2,
                                       attention_mask=None, *, row_tile=1024):
    """Forward of ElectraDiscriminatorPredictions.

    x: [B, S, H] activations (any float dtype; matmul runs in bf16).
    labels: [B, S] (int/bool/float).  w1: [H, H] (in, out); b1: [H];
    w2: [H, 1] (in, out); b2: [1].
    attention_mask is accepted for signature parity but (like the reference
    forward) unused.  Returns (probs [B,S], preds [B,S], loss scalar).
    """
    del attention_mask  # unused by the reference forward
    B, S, H = x.shape
    M = B * S

    # Row tiling: per-row outputs are stored lane-dense as (rows/128, 128), so a
    # tile holds a multiple of 128 rows; multi-tile grids use 1024-row tiles so
    # the output blocks are (8, 128)-aligned.
    if ((M + _LANES - 1) // _LANES) * _LANES <= row_tile:
        tm = ((M + _LANES - 1) // _LANES) * _LANES     # single tile
    else:
        tm = max(1024, (row_tile // 1024) * 1024)
    Mp = ((M + tm - 1) // tm) * tm
    grid = Mp // tm
    sub = tm // _LANES
    out_rows = Mp // _LANES

    x2 = x.reshape(M, H)                                # no dtype upcast here
    y1 = labels.reshape(M).astype(jnp.float32)
    if Mp != M:
        x2 = jnp.pad(x2, ((0, Mp - M), (0, 0)))
        y1 = jnp.pad(y1, (0, Mp - M))
    y2 = y1.reshape(out_rows, _LANES)                   # lane-dense labels

    w1_bf = w1.astype(jnp.bfloat16)                     # (H, H), resident in VMEM
    b1_2 = b1.reshape(1, H).astype(jnp.float32)
    w2_row = w2.reshape(1, H).astype(jnp.float32)
    b2_2 = b2.reshape(1, 1).astype(jnp.float32)

    # VMEM budget: double-buffered x tiles + resident bf16 W1 + f32 h intermediate.
    # TODO(synk): for very large H (H*H*2 bytes near the 64 MiB v7x cap), W1 should
    # get a K-tiling grid axis instead of being fully resident.
    vmem_limit = int(1.5 * (2 * tm * H * x2.dtype.itemsize   # x tiles (dbl-buffered)
                            + 2 * H * H * 2                  # W1 (bf16)
                            + tm * H * 4                     # h intermediate
                            + 8 * sub * _LANES * 4))         # small in/out tiles
    vmem_limit = min(max(vmem_limit, 32 * 1024 * 1024), 128 * 1024 * 1024)

    grid_spec = pltpu.PrefetchScalarGridSpec(
        num_scalar_prefetch=0,
        grid=(grid,),
        in_specs=[
            pl.BlockSpec((tm, H), lambda i: (i, 0)),         # x row tile
            pl.BlockSpec((H, H), lambda i: (0, 0)),          # W1 (resident)
            pl.BlockSpec((1, H), lambda i: (0, 0)),          # b1
            pl.BlockSpec((1, H), lambda i: (0, 0)),          # w2 row
            pl.BlockSpec((1, 1), lambda i: (0, 0)),          # b2
            pl.BlockSpec((sub, _LANES), lambda i: (i, 0)),   # labels tile (lane-dense)
        ],
        out_specs=[
            pl.BlockSpec((sub, _LANES), lambda i: (i, 0)),   # probs
            pl.BlockSpec((sub, _LANES), lambda i: (i, 0)),   # preds
            pl.BlockSpec((sub, _LANES), lambda i: (i, 0)),   # per-element BCE
        ],
    )

    probs_t, preds_t, bce_t = pl.pallas_call(
        _electra_disc_kernel,
        out_shape=(
            jax.ShapeDtypeStruct((out_rows, _LANES), jnp.float32),
            jax.ShapeDtypeStruct((out_rows, _LANES), jnp.float32),
            jax.ShapeDtypeStruct((out_rows, _LANES), jnp.float32),
        ),
        grid_spec=grid_spec,
        compiler_params=pltpu.CompilerParams(
            dimension_semantics=("parallel",),       # tiles are independent
            vmem_limit_bytes=vmem_limit),
    )(x2, w1_bf, b1_2, w2_row, b2_2, y2)

    # Drop padded rows, restore [B, S], and take the BCE mean over the true M rows.
    probs = probs_t.reshape(-1)[:M].reshape(B, S)
    preds = preds_t.reshape(-1)[:M].reshape(B, S)
    loss = jnp.sum(bce_t.reshape(-1)[:M]) / M        # BCEWithLogitsLoss(reduction='mean')
    return probs, preds, loss


if __name__ == "__main__":
    B, S, H = 2, 8, 32  # small [batch, seq, hidden] consistent with the module
    key = jax.random.PRNGKey(0)
    k_x, k_lab, k_w1, k_b1, k_w2, k_b2 = jax.random.split(key, 6)

    x = jax.random.normal(k_x, (B, S, H), dtype=jnp.float32)
    labels = (jax.random.uniform(k_lab, (B, S)) > 0.5).astype(jnp.int32)
    attention_mask = jnp.ones((B, S), dtype=jnp.int32)   # unused by the forward

    # Deterministic parameter init (same fan-in uniform scheme as nn.Linear).
    bound = 1.0 / math.sqrt(H)
    w1 = jax.random.uniform(k_w1, (H, H), jnp.float32, -bound, bound)  # (in, out)
    b1 = jax.random.uniform(k_b1, (H,), jnp.float32, -bound, bound)
    w2 = jax.random.uniform(k_w2, (H, 1), jnp.float32, -bound, bound)  # (in, out)
    b2 = jax.random.uniform(k_b2, (1,), jnp.float32, -bound, bound)

    probs, preds, loss = electra_discriminator_predictions(
        x, labels, w1, b1, w2, b2, attention_mask)
    jax.block_until_ready((probs, preds, loss))

    assert probs.shape == (B, S) and preds.shape == (B, S) and loss.shape == ()
    assert bool(jnp.isfinite(loss))
    print("KERNEL_OK")
</pallas_src>

<mosaic_0001>
module attributes {stable_mosaic.version = 11 : i64} {
  func.func @_electra_disc_kernel(%arg0: i32, %arg1: memref<128x32xf32, #tpu.memory_space<vmem>>, %arg2: memref<32x32xbf16, #tpu.memory_space<vmem>>, %arg3: memref<1x32xf32, #tpu.memory_space<vmem>>, %arg4: memref<1x32xf32, #tpu.memory_space<vmem>>, %arg5: memref<1x1xf32, #tpu.memory_space<vmem>>, %arg6: memref<1x128xf32, #tpu.memory_space<vmem>>, %arg7: memref<1x128xf32, #tpu.memory_space<vmem>>, %arg8: memref<1x128xf32, #tpu.memory_space<vmem>>, %arg9: memref<1x128xf32, #tpu.memory_space<vmem>>) attributes {dimension_semantics = [#tpu.dimension_semantics<parallel>], iteration_bounds = array<i64: 1>, scalar_prefetch = 0 : i64, scratch_operands = 0 : i64, tpu.core_type = #tpu.core_type<tc>, window_params = [{transform_indices = @transform_0, window_bounds = array<i64: 128, 32>}, {pipeline_mode = #tpu.pipeline_mode<synchronous>, transform_indices = @transform_1, window_bounds = array<i64: 32, 32>}, {pipeline_mode = #tpu.pipeline_mode<synchronous>, transform_indices = @transform_2, window_bounds = array<i64: 1, 32>}, {pipeline_mode = #tpu.pipeline_mode<synchronous>, transform_indices = @transform_3, window_bounds = array<i64: 1, 32>}, {pipeline_mode = #tpu.pipeline_mode<synchronous>, transform_indices = @transform_4, window_bounds = array<i64: 1, 1>}, {transform_indices = @transform_5, window_bounds = array<i64: 1, 128>}, {transform_indices = @transform_6, window_bounds = array<i64: 1, 128>}, {transform_indices = @transform_7, window_bounds = array<i64: 1, 128>}, {transform_indices = @transform_8, window_bounds = array<i64: 1, 128>}]} {
    %c0 = arith.constant 0 : index
    %c0_0 = arith.constant 0 : index
    %0 = vector.load %arg1[%c0, %c0_0] : memref<128x32xf32, #tpu.memory_space<vmem>>, vector<128x32xf32>
    %1 = arith.truncf %0 : vector<128x32xf32> to vector<128x32xbf16>
    %c0_1 = arith.constant 0 : index
    %c0_2 = arith.constant 0 : index
    %2 = vector.load %arg2[%c0_1, %c0_2] : memref<32x32xbf16, #tpu.memory_space<vmem>>, vector<32x32xbf16>
    %cst = arith.constant dense<0.000000e+00> : vector<128x32xf32>
    %3 = tpu.matmul %1, %2, %cst {dimension_numbers = #tpu.dot_dimension_numbers<[1], [0], [0], [1], [0, 0, 1, 1], [], []>} : vector<128x32xbf16>, vector<32x32xbf16>, vector<128x32xf32> -> vector<128x32xf32>
    %c0_3 = arith.constant 0 : index
    %c0_4 = arith.constant 0 : index
    %4 = vector.load %arg3[%c0_3, %c0_4] : memref<1x32xf32, #tpu.memory_space<vmem>>, vector<1x32xf32>
    %5 = vector.broadcast %4 : vector<1x32xf32> to vector<128x32xf32>
    %6 = arith.addf %3, %5 : vector<128x32xf32>
    %cst_5 = arith.constant 5.000000e-01 : f32
    %7 = vector.broadcast %cst_5 : f32 to vector<128x32xf32>
    %8 = arith.mulf %7, %6 : vector<128x32xf32>
    %cst_6 = arith.constant 4.471500e-02 : f32
    %9 = vector.broadcast %cst_6 : f32 to vector<128x32xf32>
    %10 = arith.mulf %9, %6 : vector<128x32xf32>
    %11 = arith.mulf %10, %6 : vector<128x32xf32>
    %12 = arith.mulf %11, %6 : vector<128x32xf32>
    %13 = arith.addf %6, %12 : vector<128x32xf32>
    %cst_7 = arith.constant 0.797884583 : f32
    %14 = vector.broadcast %cst_7 : f32 to vector<128x32xf32>
    %15 = arith.mulf %14, %13 : vector<128x32xf32>
    %16 = math.tanh %15 : vector<128x32xf32>
    %cst_8 = arith.constant 1.000000e+00 : f32
    %17 = vector.broadcast %cst_8 : f32 to vector<128x32xf32>
    %18 = arith.addf %17, %16 : vector<128x32xf32>
    %19 = arith.mulf %8, %18 : vector<128x32xf32>
    %c0_9 = arith.constant 0 : index
    %c0_10 = arith.constant 0 : index
    %20 = vector.load %arg4[%c0_9, %c0_10] : memref<1x32xf32, #tpu.memory_space<vmem>>, vector<1x32xf32>
    %cst_11 = arith.constant dense<0.000000e+00> : vector<1x128xf32>
    %21 = tpu.matmul %20, %19, %cst_11 {dimension_numbers = #tpu.dot_dimension_numbers<[1], [1], [0], [0], [0, 0, 1, 0], [], []>} : vector<1x32xf32>, vector<128x32xf32>, vector<1x128xf32> -> vector<1x128xf32>
    %c0_12 = arith.constant 0 : index
    %c0_13 = arith.constant 0 : index
    %22 = vector.load %arg5[%c0_12, %c0_13] : memref<1x1xf32, #tpu.memory_space<vmem>>, vector<1x1xf32>
    %23 = vector.broadcast %22 : vector<1x1xf32> to vector<1x128xf32>
    %24 = arith.addf %21, %23 : vector<1x128xf32>
    %c0_14 = arith.constant 0 : index
    %c0_15 = arith.constant 0 : index
    %25 = vector.load %arg6[%c0_14, %c0_15] : memref<1x128xf32, #tpu.memory_space<vmem>>, vector<1x128xf32>
    %cst_16 = arith.constant 0.000000e+00 : f32
    %26 = vector.broadcast %cst_16 : f32 to vector<1x128xf32>
    %27 = arith.subf %26, %24 : vector<1x128xf32>
    %28 = math.exp %27 : vector<1x128xf32>
    %cst_17 = arith.constant 1.000000e+00 : f32
    %29 = vector.broadcast %cst_17 : f32 to vector<1x128xf32>
    %30 = arith.addf %29, %28 : vector<1x128xf32>
    %31 = tpu.reciprocal %30 {approx = true} : vector<1x128xf32> -> vector<1x128xf32>
    %c0_18 = arith.constant 0 : index
    %c0_19 = arith.constant 0 : index
    %32 = vector.load %arg7[%c0_18, %c0_19] : memref<1x128xf32, #tpu.memory_space<vmem>>, vector<1x128xf32>
    tpu.vector_store %arg7[%c0_18, %c0_19], %31 {strides = array<i32>} : memref<1x128xf32, #tpu.memory_space<vmem>>, vector<1x128xf32>,
    %cst_20 = arith.constant 0.000000e+00 : f32
    %33 = vector.broadcast %cst_20 : f32 to vector<1x128xf32>
    %34 = arith.cmpf ogt, %24, %33 : vector<1x128xf32>
    %cst_21 = arith.constant 1.000000e+00 : f32
    %cst_22 = arith.constant 0.000000e+00 : f32
    %35 = vector.broadcast %cst_21 : f32 to vector<1x128xf32>
    %36 = vector.broadcast %cst_22 : f32 to vector<1x128xf32>
    %37 = arith.select %34, %35, %36 : vector<1x128xi1>, vector<1x128xf32>
    %c0_23 = arith.constant 0 : index
    %c0_24 = arith.constant 0 : index
    %38 = vector.load %arg8[%c0_23, %c0_24] : memref<1x128xf32, #tpu.memory_space<vmem>>, vector<1x128xf32>
    tpu.vector_store %arg8[%c0_23, %c0_24], %37 {strides = array<i32>} : memref<1x128xf32, #tpu.memory_space<vmem>>, vector<1x128xf32>,
    %cst_25 = arith.constant 0.000000e+00 : f32
    %39 = vector.broadcast %cst_25 : f32 to vector<1x128xf32>
    %40 = arith.maximumf %24, %39 : vector<1x128xf32>
    %41 = arith.mulf %24, %25 : vector<1x128xf32>
    %42 = arith.subf %40, %41 : vector<1x128xf32>
    %43 = math.absf %24 : vector<1x128xf32>
    %cst_26 = arith.constant 0.000000e+00 : f32
    %44 = vector.broadcast %cst_26 : f32 to vector<1x128xf32>
    %45 = arith.subf %44, %43 : vector<1x128xf32>
    %46 = math.exp %45 : vector<1x128xf32>
    %cst_27 = arith.constant 1.000000e+00 : f32
    %47 = vector.broadcast %cst_27 : f32 to vector<1x128xf32>
    %48 = arith.addf %47, %46 : vector<1x128xf32>
    %49 = math.log %48 : vector<1x128xf32>
    %50 = arith.addf %42, %49 : vector<1x128xf32>
    %c0_28 = arith.constant 0 : index
    %c0_29 = arith.constant 0 : index
    %51 = vector.load %arg9[%c0_28, %c0_29] : memref<1x128xf32, #tpu.memory_space<vmem>>, vector<1x128xf32>
    tpu.vector_store %arg9[%c0_28, %c0_29], %50 {strides = array<i32>} : memref<1x128xf32, #tpu.memory_space<vmem>>, vector<1x128xf32>,
    return
  }
  func.func @transform_0(%arg0: i32) -> (i32, i32) {
    %c0_i32 = arith.constant 0 : i32
    %c0_i32_0 = arith.constant 0 : i32
    return %arg0, %c0_i32 : i32, i32
  }
  func.func @transform_1(%arg0: i32) -> (i32, i32) {
    %c0_i32 = arith.constant 0 : i32
    %c0_i32_0 = arith.constant 0 : i32
    %c0_i32_1 = arith.constant 0 : i32
    return %c0_i32, %c0_i32_0 : i32, i32
  }
  func.func @transform_2(%arg0: i32) -> (i32, i32) {
    %c0_i32 = arith.constant 0 : i32
    %c0_i32_0 = arith.constant 0 : i32
    %c0_i32_1 = arith.constant 0 : i32
    return %c0_i32, %c0_i32_0 : i32, i32
  }
  func.func @transform_3(%arg0: i32) -> (i32, i32) {
    %c0_i32 = arith.constant 0 : i32
    %c0_i32_0 = arith.constant 0 : i32
    %c0_i32_1 = arith.constant 0 : i32
    return %c0_i32, %c0_i32_0 : i32, i32
  }
  func.func @transform_4(%arg0: i32) -> (i32, i32) {
    %c0_i32 = arith.constant 0 : i32
    %c0_i32_0 = arith.constant 0 : i32
    %c0_i32_1 = arith.constant 0 : i32
    return %c0_i32, %c0_i32_0 : i32, i32
  }
  func.func @transform_5(%arg0: i32) -> (i32, i32) {
    %c0_i32 = arith.constant 0 : i32
    %c0_i32_0 = arith.constant 0 : i32
    return %arg0, %c0_i32 : i32, i32
  }
  func.func @transform_6(%arg0: i32) -> (i32, i32) {
    %c0_i32 = arith.constant 0 : i32
    %c0_i32_0 = arith.constant 0 : i32
    return %arg0, %c0_i32 : i32, i32
  }
  func.func @transform_7(%arg0: i32) -> (i32, i32) {
    %c0_i32 = arith.constant 0 : i32
    %c0_i32_0 = arith.constant 0 : i32
    return %arg0, %c0_i32 : i32, i32
  }
  func.func @transform_8(%arg0: i32) -> (i32, i32) {
    %c0_i32 = arith.constant 0 : i32
    %c0_i32_0 = arith.constant 0 : i32
    return %arg0, %c0_i32 : i32, i32
  }
}

</mosaic_0001>

<llo_original>
// kernel: tpu_custom_call.1
$region0: #{tpu_custom_call.1}
  #allocation0 [shape = 'u32[]', space=smem, size = 0x4, offset = 0x4, fixed_abs, tag = 'smem constant byte address 0x4 - core index']
  #allocation1 [shape = 'u32[72,128]{1,0:T(1,128)}', space=vmem, size = 0x9000, scoped, tag = 'internal scratch']
  #allocation2 [shape = 'f32[1,1]{1,0:T(1,128)S(1)}', space=vmem, size = 0x200, scoped, tag = 'scoped memory for tpu_custom_call.1']
  %s0 = inlined_call_operand.vmem [shape: f32[128,32], index: 0, kind: input, shape index: {}]
  %s1 = inlined_call_operand.vmem [shape: bf16[32,32], index: 1, kind: input, shape index: {}]
  %s2 = inlined_call_operand.vmem [shape: f32[1,32], index: 2, kind: input, shape index: {}]
  %s3 = inlined_call_operand.vmem [shape: f32[1,32], index: 3, kind: input, shape index: {}]
  %s4 = inlined_call_operand.<no memory space> [shape: f32[1,1], index: 4, kind: input, shape index: {}]
  %s5 = inlined_call_operand.vmem [shape: f32[1,128], index: 5, kind: input, shape index: {}]
  %s6 = inlined_call_operand.hbm [shape: f32[1,128], index: 6, kind: output, shape index: {0}]
  %s7 = inlined_call_operand.hbm [shape: f32[1,128], index: 7, kind: output, shape index: {1}]
  %s8 = inlined_call_operand.hbm [shape: f32[1,128], index: 8, kind: output, shape index: {2}]
  %9 = xla_tuple %s6, %s7, %s8
  %s10 = sld [smem:[#allocation0]]
  $region50: #{tpu_custom_call.1} parent=0
    _
  %s12 = ssub.s32 1, %s10
  %s13 = scalar_select 0, %s12, %s10
  %v14 = vstv %s4
  %15 = vst [vmem:[#allocation2] sm:$0x1] %v14
  $region1: #{tpu_custom_call.1} parent=0
    #allocation3 [shape = 'u8[512]{0}', space=vmem, size = 0x400, scoped, tag = 'output window, operand 0, single buffered']
    #allocation4 [shape = 's32[1]{0}', space=sflag, size = 0x4, scoped, tag = 'scoped memory for tpu_custom_call.1']
    #allocation5 [shape = 'u8[512]{0}', space=vmem, size = 0x400, scoped, tag = 'output window, operand 1, single buffered']
    #allocation6 [shape = 's32[1]{0}', space=sflag, size = 0x4, scoped, tag = 'scoped memory for tpu_custom_call.1']
    #allocation7 [shape = 'u8[512]{0}', space=vmem, size = 0x400, scoped, tag = 'output window, operand 2, single buffered']
    %16 = vsyncpa [#allocation4], 0
    %17 = vsyncpa [#allocation6], 0
    // Predicated region
    $region2: #{tpu_custom_call.1} parent=1 // pred_check
      _
    $region3: #{tpu_custom_call.1} parent=1 // pred_check_branch
      %19 = sbr.rel (0) target = $region5
    $region4: #{tpu_custom_call.1} parent=1 // pred_region
      _
    $region5: #{tpu_custom_call.1} parent=1 // pred_fallthru
      _
    // Predicated region
    $region6: #{tpu_custom_call.1} parent=1 // pred_check
      _
    $region7: #{tpu_custom_call.1} parent=1 // pred_check_branch
      %21 = sbr.rel (0) target = $region9
    $region8: #{tpu_custom_call.1} parent=1 // pred_region
      _
    $region9: #{tpu_custom_call.1} parent=1 // pred_fallthru
      _
    // Predicated region
    $region10: #{tpu_custom_call.1} parent=1 // pred_check
      _
    $region11: #{tpu_custom_call.1} parent=1 // pred_check_branch
      %23 = sbr.rel (0) target = $region13
    $region12: #{tpu_custom_call.1} parent=1 // pred_region
      _
    $region13: #{tpu_custom_call.1} parent=1 // pred_fallthru
      _
    // Predicated region
    $region14: #{tpu_custom_call.1} parent=1 // pred_check
      _
    $region15: #{tpu_custom_call.1} parent=1 // pred_check_branch
      %25 = sbr.rel (0) target = $region17
    $region16: #{tpu_custom_call.1} parent=1 // pred_region
      _
    $region17: #{tpu_custom_call.1} parent=1 // pred_fallthru
      _
    // Predicated region
    $region18: #{tpu_custom_call.1} parent=1 // pred_check
      _
    $region19: #{tpu_custom_call.1} parent=1 // pred_check_branch
      %27 = sbr.rel (0) target = $region21
    $region20: #{tpu_custom_call.1} parent=1 // pred_region
      _
    $region21: #{tpu_custom_call.1} parent=1 // pred_fallthru
      _
    // Predicated region
    $region22: #{tpu_custom_call.1} parent=1 // pred_check
      _
    $region23: #{tpu_custom_call.1} parent=1 // pred_check_branch
      %29 = sbr.rel (0) target = $region25
    $region24: #{tpu_custom_call.1} parent=1 // pred_region
      _
    $region25: #{tpu_custom_call.1} parent=1 // pred_fallthru
      _
    %v31 = vld [vmem:[%s0] sm:$0xff]
    %v32 = vld [vmem:[%s0 + $0x8] sm:$0xff]
    %v33 = vld [vmem:[%s0 + $0x10] sm:$0xff]
    %v34 = vld [vmem:[%s0 + $0x18] sm:$0xff]
    %v35 = vld [vmem:[%s0 + $0x20] sm:$0xff]
    %v36 = vld [vmem:[%s0 + $0x28] sm:$0xff]
    %v37 = vld [vmem:[%s0 + $0x30] sm:$0xff]
    %v38 = vld [vmem:[%s0 + $0x38] sm:$0xff]
    %v39 = vld [vmem:[%s0 + $0x40] sm:$0xff]
    %v40 = vld [vmem:[%s0 + $0x48] sm:$0xff]
    %v41 = vld [vmem:[%s0 + $0x50] sm:$0xff]
    %v42 = vld [vmem:[%s0 + $0x58] sm:$0xff]
    %v43 = vld [vmem:[%s0 + $0x60] sm:$0xff]
    %v44 = vld [vmem:[%s0 + $0x68] sm:$0xff]
    %v45 = vld [vmem:[%s0 + $0x70] sm:$0xff]
    %v46 = vld [vmem:[%s0 + $0x78] sm:$0xff]
    %v47 = vpack.c.bf16 %v32, %v31
    %v48 = vpack.c.bf16 %v34, %v33
    %v49 = vpack.c.bf16 %v36, %v35
    %v50 = vpack.c.bf16 %v38, %v37
    %v51 = vpack.c.bf16 %v40, %v39
    %v52 = vpack.c.bf16 %v42, %v41
    %v53 = vpack.c.bf16 %v44, %v43
    %v54 = vpack.c.bf16 %v46, %v45
    %v55 = vld [vmem:[%s1] sm:$0xf]
    %v56 = vld [vmem:[%s1 + $0x4] sm:$0xf]
    %v57 = vld [vmem:[%s1 + $0x8] sm:$0xf]
    %v58 = vld [vmem:[%s1 + $0xc] sm:$0xf]
    %v59 = vld [vmem:[%s2] sm:$0x1]
    %v61 = vperm.slane %v59, 0
    %v67 = vunpack.c.l.b16 %v55
    %v68 = vunpack.c.l.b16 %v56
    %v69 = vunpack.c.l.b16 %v57
    %v70 = vunpack.c.l.b16 %v58
    %v71 = vpack.c.b16 %v68, %v67
    %v72 = vpack.c.b16 %v70, %v69
    %vm75 = vcmask 261120
    %v77 = vsel %vm75, %v47, 0
    %v80 = vsel %vm75, %v48, 0
    %v83 = vsel %vm75, %v49, 0
    %v86 = vsel %vm75, %v50, 0
    %v89 = vsel %vm75, %v51, 0
    %v92 = vsel %vm75, %v52, 0
    %v95 = vsel %vm75, %v53, 0
    %v98 = vsel %vm75, %v54, 0
    %100 = vmatpush.bf16.msra.mxu0 0
    %101 = vmatpush.bf16.msra.mxu0 0
    %102 = vmatpush.bf16.msra.mxu0 0
    %103 = vmatpush.bf16.msra.mxu0 0
    %104 = vmatpush.bf16.msra.mxu0 0
    %105 = vmatpush.bf16.msra.mxu0 0
    %106 = vmatpush.bf16.msra.mxu0 %v72
    %107 = vmatpush.bf16.msra.mxu0 %v71
    %108 = vmatmul.bf16.gmra.mxu0 %v77
    %v109 = vpop.f32.mrf.mxu0
    %v110 = vadd.f32 %v61, %v109
    %v111 = vpop.f32.mrf.mxu0
    %v112 = vadd.f32 %v61, %v111
    %113 = vmatmul.bf16.gmra.mxu0 %v80
    %v114 = vpop.f32.mrf.mxu0
    %v115 = vadd.f32 %v61, %v114
    %v116 = vpop.f32.mrf.mxu0
    %v117 = vadd.f32 %v61, %v116
    %118 = vmatmul.bf16.gmra.mxu0 %v83
    %v119 = vpop.f32.mrf.mxu0
    %v120 = vadd.f32 %v61, %v119
    %v121 = vpop.f32.mrf.mxu0
    %v122 = vadd.f32 %v61, %v121
    %123 = vmatmul.bf16.gmra.mxu0 %v86
    %v124 = vpop.f32.mrf.mxu0
    %v125 = vadd.f32 %v61, %v124
    %v126 = vpop.f32.mrf.mxu0
    %v127 = vadd.f32 %v61, %v126
    %128 = vmatmul.bf16.gmra.mxu0 %v89
    %v129 = vpop.f32.mrf.mxu0
    %v130 = vadd.f32 %v61, %v129
    %v131 = vpop.f32.mrf.mxu0
    %v132 = vadd.f32 %v61, %v131
    %133 = vmatmul.bf16.gmra.mxu0 %v92
    %v134 = vpop.f32.mrf.mxu0
    %v135 = vadd.f32 %v61, %v134
    %v136 = vpop.f32.mrf.mxu0
    %v137 = vadd.f32 %v61, %v136
    %138 = vmatmul.bf16.gmra.mxu0 %v95
    %v139 = vpop.f32.mrf.mxu0
    %v140 = vadd.f32 %v61, %v139
    %v141 = vpop.f32.mrf.mxu0
    %v142 = vadd.f32 %v61, %v141
    %143 = vmatmul.bf16.gmra.mxu0 %v98
    %v144 = vpop.f32.mrf.mxu0
    %v145 = vadd.f32 %v61, %v144
    %v146 = vpop.f32.mrf.mxu0
    %v147 = vadd.f32 %v61, %v146
    %148 = vdwg.mxu0
    %v149 = vmul.f32 %v110, 0.5
    %v150 = vmul.f32 %v112, 0.5
    %v151 = vmul.f32 %v115, 0.5
    %v152 = vmul.f32 %v117, 0.5
    %v153 = vmul.f32 %v120, 0.5
    %v154 = vmul.f32 %v122, 0.5
    %v155 = vmul.f32 %v125, 0.5
    %v156 = vmul.f32 %v127, 0.5
    %v157 = vmul.f32 %v130, 0.5
    %v158 = vmul.f32 %v132, 0.5
    %v159 = vmul.f32 %v135, 0.5
    %v160 = vmul.f32 %v137, 0.5
    %v161 = vmul.f32 %v140, 0.5
    %v162 = vmul.f32 %v142, 0.5
    %v163 = vmul.f32 %v145, 0.5
    %v164 = vmul.f32 %v147, 0.5
    %v165 = vmul.f32 %v110, 0.044715
    %v166 = vmul.f32 %v112, 0.044715
    %v167 = vmul.f32 %v115, 0.044715
    %v168 = vmul.f32 %v117, 0.044715
    %v169 = vmul.f32 %v120, 0.044715
    %v170 = vmul.f32 %v122, 0.044715
    %v171 = vmul.f32 %v125, 0.044715
    %v172 = vmul.f32 %v127, 0.044715
    %v173 = vmul.f32 %v130, 0.044715
    %v174 = vmul.f32 %v132, 0.044715
    %v175 = vmul.f32 %v135, 0.044715
    %v176 = vmul.f32 %v137, 0.044715
    %v177 = vmul.f32 %v140, 0.044715
    %v178 = vmul.f32 %v142, 0.044715
    %v179 = vmul.f32 %v145, 0.044715
    %v180 = vmul.f32 %v147, 0.044715
    %v181 = vmul.f32 %v165, %v110
    %v182 = vmul.f32 %v166, %v112
    %v183 = vmul.f32 %v167, %v115
    %v184 = vmul.f32 %v168, %v117
    %v185 = vmul.f32 %v169, %v120
    %v186 = vmul.f32 %v170, %v122
    %v187 = vmul.f32 %v171, %v125
    %v188 = vmul.f32 %v172, %v127
    %v189 = vmul.f32 %v173, %v130
    %v190 = vmul.f32 %v174, %v132
    %v191 = vmul.f32 %v175, %v135
    %v192 = vmul.f32 %v176, %v137
    %v193 = vmul.f32 %v177, %v140
    %v194 = vmul.f32 %v178, %v142
    %v195 = vmul.f32 %v179, %v145
    %v196 = vmul.f32 %v180, %v147
    %v197 = vmul.f32 %v181, %v110
    %v198 = vmul.f32 %v182, %v112
    %v199 = vmul.f32 %v183, %v115
    %v200 = vmul.f32 %v184, %v117
    %v201 = vmul.f32 %v185, %v120
    %v202 = vmul.f32 %v186, %v122
    %v203 = vmul.f32 %v187, %v125
    %v204 = vmul.f32 %v188, %v127
    %v205 = vmul.f32 %v189, %v130
    %v206 = vmul.f32 %v190, %v132
    %v207 = vmul.f32 %v191, %v135
    %v208 = vmul.f32 %v192, %v137
    %v209 = vmul.f32 %v193, %v140
    %v210 = vmul.f32 %v194, %v142
    %v211 = vmul.f32 %v195, %v145
    %v212 = vmul.f32 %v196, %v147
    %v213 = vadd.f32 %v110, %v197
    %v214 = vadd.f32 %v112, %v198
    %v215 = vadd.f32 %v115, %v199
    %v216 = vadd.f32 %v117, %v200
    %v217 = vadd.f32 %v120, %v201
    %v218 = vadd.f32 %v122, %v202
    %v219 = vadd.f32 %v125, %v203
    %v220 = vadd.f32 %v127, %v204
    %v221 = vadd.f32 %v130, %v205
    %v222 = vadd.f32 %v132, %v206
    %v223 = vadd.f32 %v135, %v207
    %v224 = vadd.f32 %v137, %v208
    %v225 = vadd.f32 %v140, %v209
    %v226 = vadd.f32 %v142, %v210
    %v227 = vadd.f32 %v145, %v211
    %v228 = vadd.f32 %v147, %v212
    %v229 = vmul.f32 %v213, 0.7978846
    %v230 = vmul.f32 %v214, 0.7978846
    %v231 = vmul.f32 %v215, 0.7978846
    %v232 = vmul.f32 %v216, 0.7978846
    %v233 = vmul.f32 %v217, 0.7978846
    %v234 = vmul.f32 %v218, 0.7978846
    %v235 = vmul.f32 %v219, 0.7978846
    %v236 = vmul.f32 %v220, 0.7978846
    %v237 = vmul.f32 %v221, 0.7978846
    %v238 = vmul.f32 %v222, 0.7978846
    %v239 = vmul.f32 %v223, 0.7978846
    %v240 = vmul.f32 %v224, 0.7978846
    %v241 = vmul.f32 %v225, 0.7978846
    %v242 = vmul.f32 %v226, 0.7978846
    %v243 = vmul.f32 %v227, 0.7978846
    %v244 = vmul.f32 %v228, 0.7978846
    %v245 = vtanh.pop %v229
    %v246 = vtanh.pop %v230
    %v247 = vtanh.pop %v231
    %v248 = vtanh.pop %v232
    %v249 = vtanh.pop %v233
    %v250 = vtanh.pop %v234
    %v251 = vtanh.pop %v235
    %v252 = vtanh.pop %v236
    %v253 = vtanh.pop %v237
    %v254 = vtanh.pop %v238
    %v255 = vtanh.pop %v239
    %v256 = vtanh.pop %v240
    %v257 = vtanh.pop %v241
    %v258 = vtanh.pop %v242
    %v259 = vtanh.pop %v243
    %v260 = vtanh.pop %v244
    %v261 = vadd.f32 %v245, 1.0
    %v262 = vadd.f32 %v246, 1.0
    %v263 = vadd.f32 %v247, 1.0
    %v264 = vadd.f32 %v248, 1.0
    %v265 = vadd.f32 %v249, 1.0
    %v266 = vadd.f32 %v250, 1.0
    %v267 = vadd.f32 %v251, 1.0
    %v268 = vadd.f32 %v252, 1.0
    %v269 = vadd.f32 %v253, 1.0
    %v270 = vadd.f32 %v254, 1.0
    %v271 = vadd.f32 %v255, 1.0
    %v272 = vadd.f32 %v256, 1.0
    %v273 = vadd.f32 %v257, 1.0
    %v274 = vadd.f32 %v258, 1.0
    %v275 = vadd.f32 %v259, 1.0
    %v276 = vadd.f32 %v260, 1.0
    %v277 = vmul.f32 %v149, %v261
    %v278 = vmul.f32 %v150, %v262
    %v279 = vmul.f32 %v151, %v263
    %v280 = vmul.f32 %v152, %v264
    %v281 = vmul.f32 %v153, %v265
    %v282 = vmul.f32 %v154, %v266
    %v283 = vmul.f32 %v155, %v267
    %v284 = vmul.f32 %v156, %v268
    %v285 = vmul.f32 %v157, %v269
    %v286 = vmul.f32 %v158, %v270
    %v287 = vmul.f32 %v159, %v271
    %v288 = vmul.f32 %v160, %v272
    %v289 = vmul.f32 %v161, %v273
    %v290 = vmul.f32 %v162, %v274
    %v291 = vmul.f32 %v163, %v275
    %v292 = vmul.f32 %v164, %v276
    %v293 = vld [vmem:[%s3] sm:$0x1]
    %v294 = vld [vmem:[#allocation2] sm:$0x1]
    %296 = vset.pattern.permute.xlu0 0
    %297 = vperm.xlu0 %296, %v294
    %v298 = vpop.permute.xlu0 %297
    %v300 = vperm.slane %v298, 0
    %v302 = vsel %vm75, %v293, 0
    %v305 = vsel %vm75, %v277, 0
    %v308 = vsel %vm75, %v278, 0
    %v311 = vsel %vm75, %v279, 0
    %v314 = vsel %vm75, %v280, 0
    %v317 = vsel %vm75, %v281, 0
    %v320 = vsel %vm75, %v282, 0
    %v323 = vsel %vm75, %v283, 0
    %v326 = vsel %vm75, %v284, 0
    %v329 = vsel %vm75, %v285, 0
    %v332 = vsel %vm75, %v286, 0
    %v335 = vsel %vm75, %v287, 0
    %v338 = vsel %vm75, %v288, 0
    %v341 = vsel %vm75, %v289, 0
    %v344 = vsel %vm75, %v290, 0
    %v347 = vsel %vm75, %v291, 0
    %v350 = vsel %vm75, %v292, 0
    %352 = vmatpush.xpose.msra.mxu0 %v350
    %353 = vmatpush.xpose.msra.mxu0 %v347
    %354 = vmatpush.xpose.msra.mxu0 %v344
    %355 = vmatpush.xpose.msra.mxu0 %v341
    %356 = vmatpush.xpose.msra.mxu0 %v338
    %357 = vmatpush.xpose.msra.mxu0 %v335
    %358 = vmatpush.xpose.msra.mxu0 %v332
    %359 = vmatpush.xpose.msra.mxu0 %v329
    %360 = vmatpush.xpose.msra.mxu0 %v326
    %361 = vmatpush.xpose.msra.mxu0 %v323
    %362 = vmatpush.xpose.msra.mxu0 %v320
    %363 = vmatpush.xpose.msra.mxu0 %v317
    %364 = vmatpush.xpose.msra.mxu0 %v314
    %365 = vmatpush.xpose.msra.mxu0 %v311
    %366 = vmatpush.xpose.msra.mxu0 %v308
    %367 = vmatpush.xpose.msra.mxu0 %v305
    %368 = vmatmul.f32.gmra.mxu0 %v302
    %v369 = vpop.f32.mrf.mxu0
    %v370 = vadd.f32 %v300, %v369
    %371 = vdwg.mxu0
    %v372 = vld [vmem:[%s5] sm:$0x1]
    %v373 = vsub.f32 0.0, %v370
    %v374 = vmul.f32 %v373, 1.442695
    %v375 = vpow.pop %v374
    %v376 = vadd.f32 %v375, 1.0
    %v377 = vrcp.pop %v376
    %378 = vst [vmem:[#allocation3] sm:$0x1] %v377
    %vm379 = vcmp.gt.f32.partialorder %v370, 0.0
    %v380 = vsel %vm379, 1.0, 0.0
    %381 = vst [vmem:[#allocation5] sm:$0x1] %v380
    %v382 = vmax.f32 %v370, 0.0
    %v383 = vmul.f32 %v370, %v372
    %v384 = vsub.f32 %v382, %v383
    %v385 = vand.u32 2147483647, %v370
    %v386 = vsub.f32 0.0, %v385
    %v387 = vmul.f32 %v386, 1.442695
    %v388 = vpow.pop %v387
    %v389 = vadd.f32 %v388, 1.0
    %v390 = vlog2.pop %v389
    %v391 = vmul.f32 %v390, 0.6931472
    %v392 = vadd.f32 %v384, %v391
    %393 = vst [vmem:[#allocation7] sm:$0x1] %v392
    // Predicated region
    $region26: #{tpu_custom_call.1} parent=1 // pred_check
      _
    $region27: #{tpu_custom_call.1} parent=1 // pred_check_branch
      %395 = sbr.rel (0) target = $region29
    $region28: #{tpu_custom_call.1} parent=1 // pred_region
      %397 = vsyncadd [#allocation4], 0
      %s399 = sshll.u32 [#allocation3], 4
      %s400 = int_to_ptr.vmem [resolvable:$true] %s399
      %s401 = sshll.u32 %s6, 4
      %s402 = int_to_ptr.hbm [resolvable:$true] %s401
      %404 = dma.vmem_to_hbm [thread:$0]  %s400, 16, %s402, [#allocation4]
    $region29: #{tpu_custom_call.1} parent=1 // pred_fallthru
      _
    // Predicated region
    $region30: #{tpu_custom_call.1} parent=1 // pred_check
      _
    $region31: #{tpu_custom_call.1} parent=1 // pred_check_branch
      %406 = sbr.rel (0) target = $region33
    $region32: #{tpu_custom_call.1} parent=1 // pred_region
      %408 = vsyncadd [#allocation6], 0
      %s410 = sshll.u32 [#allocation5], 4
      %s411 = int_to_ptr.vmem [resolvable:$true] %s410
      %s412 = sshll.u32 %s7, 4
      %s413 = int_to_ptr.hbm [resolvable:$true] %s412
      %415 = dma.vmem_to_hbm [thread:$0]  %s411, 16, %s413, [#allocation6]
    $region33: #{tpu_custom_call.1} parent=1 // pred_fallthru
      _
    // Predicated region
    $region34: #{tpu_custom_call.1} parent=1 // pred_check
      _
    $region35: #{tpu_custom_call.1} parent=1 // pred_check_branch
      %417 = sbr.rel (0) target = $region37
    $region36: #{tpu_custom_call.1} parent=1 // pred_region
      %419 = vsyncadd [#allocation6], 0
      %s421 = sshll.u32 [#allocation7], 4
      %s422 = int_to_ptr.vmem [resolvable:$true] %s421
      %s423 = sshll.u32 %s8, 4
      %s424 = int_to_ptr.hbm [resolvable:$true] %s423
      %426 = dma.vmem_to_hbm [thread:$0]  %s422, 16, %s424, [#allocation6]
    $region37: #{tpu_custom_call.1} parent=1 // pred_fallthru
      _
    // Predicated region
    $region38: #{tpu_custom_call.1} parent=1 // pred_check
      _
    $region39: #{tpu_custom_call.1} parent=1 // pred_check_branch
      %428 = sbr.rel (0) target = $region41
    $region40: #{tpu_custom_call.1} parent=1 // pred_region
      %430 = dma.done [#allocation4], 16
    $region41: #{tpu_custom_call.1} parent=1 // pred_fallthru
      _
    // Predicated region
    $region42: #{tpu_custom_call.1} parent=1 // pred_check
      _
    $region43: #{tpu_custom_call.1} parent=1 // pred_check_branch
      %432 = sbr.rel (0) target = $region45
    $region44: #{tpu_custom_call.1} parent=1 // pred_region
      %434 = dma.done [#allocation6], 16
    $region45: #{tpu_custom_call.1} parent=1 // pred_fallthru
      _
    // Predicated region
    $region46: #{tpu_custom_call.1} parent=1 // pred_check
      _
    $region47: #{tpu_custom_call.1} parent=1 // pred_check_branch
      %436 = sbr.rel (0) target = $region49
    $region48: #{tpu_custom_call.1} parent=1 // pred_region
      %438 = dma.done [#allocation6], 16
    $region49: #{tpu_custom_call.1} parent=1 // pred_fallthru
      _
    %439 = vsyncpa [#allocation4], 1
    %440 = vsyncpa [#allocation6], 1

</llo_original>
